<compile_context>
chip_gen: v7x
topology: tpu7x:2x2x1
jax: 0.10.0
libtpu: 0.0.40
codegen_flags: <defaults>
</compile_context>

<pallas_src>
import math
import jax
import jax.numpy as jnp
from jax.experimental import pallas as pl
from jax.experimental.pallas import tpu as pltpu


# ----------------------------------------------------------------------------
# In-kernel math helpers (traced inside Pallas kernels)
# ----------------------------------------------------------------------------
def _layernorm(x, w, b, eps=1e-5):
    # PyTorch LayerNorm: biased variance, eps inside sqrt.  f32 throughout.
    mu = jnp.mean(x, axis=-1, keepdims=True)
    xc = x - mu
    var = jnp.mean(xc * xc, axis=-1, keepdims=True)
    return xc * jax.lax.rsqrt(var + eps) * w + b


def _gelu_tanh(x):
    # tanh approximation of nn.GELU(): runs on the EUP (otherwise-idle VLIW
    # slot) instead of ~15 VALU FMAs + a divide per element.  Deviation from
    # the exact erf formulation is O(1e-3) absolute.
    c = 0.7978845608028654  # sqrt(2/pi)
    return 0.5 * x * (1.0 + jnp.tanh(c * (x + 0.044715 * x * x * x)))


def _compiler_params(vmem_bytes_estimate):
    # Explicit scoped-VMEM budget (defaults are only 16/32 MiB), clamped below
    # the smallest physical VMEM across generations (v7x: 64 MiB per TC).
    vmem = int(min(max(vmem_bytes_estimate, 4 << 20), 56 << 20))
    return pltpu.CompilerParams(
        dimension_semantics=("parallel",),
        vmem_limit_bytes=vmem,
    )


def _rep_spec(shape):
    # Full-array block replicated across the batch grid (constant index map).
    return pl.BlockSpec(shape, lambda b, _n=len(shape): (0,) * _n)


# ----------------------------------------------------------------------------
# Kernel 1: fused embeddings + time-emb add + (r,s,a) interleave + emb_norm
# ----------------------------------------------------------------------------
def embed_interleave_pallas(state, action, rtg, time_emb, p):
    """Returns the normalized interleaved token sequence, shape (B, 3L, D) f32."""
    B, L, S = state.shape
    A = action.shape[-1]
    D = time_emb.shape[-1]
    T = 3 * L

    def kernel(s_ref, a_ref, r_ref, t_ref, sw, sb, aw, ab, rw, rb, nw, nb, o_ref):
        te = t_ref[0]                                            # (L, D) f32
        s_emb = jnp.dot(s_ref[0].astype(jnp.bfloat16), sw[...],
                        preferred_element_type=jnp.float32) + sb[...] + te
        a_emb = jnp.dot(a_ref[0].astype(jnp.bfloat16), aw[...],
                        preferred_element_type=jnp.float32) + ab[...] + te
        r_emb = r_ref[0] * rw[...] + rb[...] + te                # Linear(1, D)
        # emb_norm is per-row, so applying it per stream == applying it after
        # the interleave.
        s_emb = _layernorm(s_emb, nw[...], nb[...])
        a_emb = _layernorm(a_emb, nw[...], nb[...])
        r_emb = _layernorm(r_emb, nw[...], nb[...])
        # Interleave rows as (r_0, s_0, a_0, r_1, ...) with exact 0/1 scatter
        # matmuls on the (mostly idle) MXU — avoids in-kernel stack/reshape
        # relayouts and a host-side HBM transpose pass.
        rows = jax.lax.broadcasted_iota(jnp.int32, (T, L), 0)
        cols = jax.lax.broadcasted_iota(jnp.int32, (T, L), 1)
        p_r = (rows == 3 * cols).astype(jnp.float32)
        p_s = (rows == 3 * cols + 1).astype(jnp.float32)
        p_a = (rows == 3 * cols + 2).astype(jnp.float32)
        seq = (jnp.dot(p_r, r_emb, preferred_element_type=jnp.float32)
               + jnp.dot(p_s, s_emb, preferred_element_type=jnp.float32)
               + jnp.dot(p_a, a_emb, preferred_element_type=jnp.float32))
        o_ref[0] = seq.astype(o_ref.dtype)

    vmem_est = (4 * L * (S + A + 1 + D) + 8 * T * D + 3 * T * L
                + 2 * (S + A + 8) * D) * 4
    return pl.pallas_call(
        kernel,
        out_shape=jax.ShapeDtypeStruct((B, T, D), jnp.float32),
        grid=(B,),
        in_specs=[
            pl.BlockSpec((1, L, S), lambda b: (b, 0, 0)),        # state
            pl.BlockSpec((1, L, A), lambda b: (b, 0, 0)),        # action
            pl.BlockSpec((1, L, 1), lambda b: (b, 0, 0)),        # rtg
            pl.BlockSpec((1, L, D), lambda b: (b, 0, 0)),        # time emb
            _rep_spec((S, D)), _rep_spec((1, D)),                # state proj
            _rep_spec((A, D)), _rep_spec((1, D)),                # action proj
            _rep_spec((1, D)), _rep_spec((1, D)),                # return proj
            _rep_spec((1, D)), _rep_spec((1, D)),                # emb_norm
        ],
        out_specs=pl.BlockSpec((1, T, D), lambda b: (b, 0, 0)),
        compiler_params=_compiler_params(vmem_est),
    )(state, action, rtg, time_emb,
      p['state_emb_w'], p['state_emb_b'],
      p['action_emb_w'], p['action_emb_b'],
      p['return_emb_w'], p['return_emb_b'],
      p['emb_norm_w'], p['emb_norm_b'])


# ----------------------------------------------------------------------------
# Kernel 2: fused pre-norm transformer block (causal MHA + MLP)
# ----------------------------------------------------------------------------
def transformer_block_pallas(x, p, num_heads):
    B, T, D = x.shape
    H = num_heads
    hd = D // H
    scale = 1.0 / math.sqrt(hd)

    def kernel(x_ref, ln1w, ln1b, w_in, b_in, w_out, b_out,
               ln2w, ln2b, w1, b1, w2, b2, o_ref, attn_buf):
        xb = x_ref[0]                                            # (T, D) f32
        # --- self-attention branch (pre-norm) ---
        nx = _layernorm(xb, ln1w[...], ln1b[...])
        qkv = jnp.dot(nx.astype(jnp.bfloat16), w_in[...],
                      preferred_element_type=jnp.float32) + b_in[...]
        q = qkv[:, 0:D]
        k = qkv[:, D:2 * D]
        v = qkv[:, 2 * D:3 * D]

        rows = jax.lax.broadcasted_iota(jnp.int32, (T, T), 0)
        cols = jax.lax.broadcasted_iota(jnp.int32, (T, T), 1)
        allowed = rows >= cols                                   # causal (tril)

        # Head outputs are written straight into a VMEM scratch slice (no
        # lane-dim concatenate / temporary head list).  Scores + softmax in f32.
        # TODO(synk): heads are still processed one at a time, so the MXU
        # contraction dim is hd (< 128 for small models); packing heads would
        # lift MXU utilization further.
        for h in range(H):
            qh = q[:, h * hd:(h + 1) * hd].astype(jnp.bfloat16)
            kh = k[:, h * hd:(h + 1) * hd].astype(jnp.bfloat16)
            vh = v[:, h * hd:(h + 1) * hd].astype(jnp.bfloat16)
            s = jax.lax.dot_general(qh, kh, (((1,), (1,)), ((), ())),
                                    preferred_element_type=jnp.float32) * scale
            s = jnp.where(allowed, s, -1e30)
            m = jnp.max(s, axis=-1, keepdims=True)
            e = jnp.exp(s - m)
            inv = pl.reciprocal(jnp.sum(e, axis=-1, keepdims=True), approx=True)
            attn_w = (e * inv).astype(jnp.bfloat16)
            attn_buf[:, h * hd:(h + 1) * hd] = jnp.dot(
                attn_w, vh, preferred_element_type=jnp.float32)
        attn = jnp.dot(attn_buf[...].astype(jnp.bfloat16), w_out[...],
                       preferred_element_type=jnp.float32) + b_out[...]
        x1 = xb + attn                                           # residual 1

        # --- MLP branch (pre-norm) ---
        nx2 = _layernorm(x1, ln2w[...], ln2b[...])
        hmid = _gelu_tanh(jnp.dot(nx2.astype(jnp.bfloat16), w1[...],
                                  preferred_element_type=jnp.float32) + b1[...])
        mlp = jnp.dot(hmid.astype(jnp.bfloat16), w2[...],
                      preferred_element_type=jnp.float32) + b2[...]
        o_ref[0] = (x1 + mlp).astype(o_ref.dtype)                # residual 2

    in_specs = [
        pl.BlockSpec((1, T, D), lambda b: (b, 0, 0)),            # x
        _rep_spec((1, D)), _rep_spec((1, D)),                    # ln1
        _rep_spec((D, 3 * D)), _rep_spec((1, 3 * D)),            # attn in-proj (bf16)
        _rep_spec((D, D)), _rep_spec((1, D)),                    # attn out-proj (bf16)
        _rep_spec((1, D)), _rep_spec((1, D)),                    # ln2
        _rep_spec((D, 4 * D)), _rep_spec((1, 4 * D)),            # mlp w1 (bf16)
        _rep_spec((4 * D, D)), _rep_spec((1, D)),                # mlp w2 (bf16)
    ]

    # bf16 weights (double-buffered) + f32 in/out activation blocks + temporaries.
    wbytes = 12 * D * D * 2 * 2
    abytes = (2 * T * D * 4) * 2 + T * (3 * D + 4 * D + D) * 4 + T * T * 4 + T * D * 4
    return pl.pallas_call(
        kernel,
        out_shape=jax.ShapeDtypeStruct((B, T, D), jnp.float32),
        grid=(B,),
        in_specs=in_specs,
        out_specs=pl.BlockSpec((1, T, D), lambda b: (b, 0, 0)),
        scratch_shapes=[pltpu.VMEM((T, D), jnp.float32)],
        compiler_params=_compiler_params(wbytes + abytes),
    )(x, p['ln1_w'], p['ln1_b'], p['attn_in_w'], p['attn_in_b'],
      p['attn_out_w'], p['attn_out_b'], p['ln2_w'], p['ln2_b'],
      p['mlp_w1'], p['mlp_b1'], p['mlp_w2'], p['mlp_b2'])


# ----------------------------------------------------------------------------
# Kernel 3: fused out_norm + state-token gather (1::3) + action head + tanh
# ----------------------------------------------------------------------------
def output_head_pallas(seq, p, max_action):
    B, T, D = seq.shape
    L = T // 3
    A = p['head_w'].shape[1]

    def kernel(x_ref, nw, nb, hw, hb, o_ref):
        xb = x_ref[0]                                            # (T, D)
        # State tokens sit at rows 1, 4, 7, ...; gather them with an exact 0/1
        # selection matmul (MXU) — avoids a strided HBM gather pass and any
        # in-kernel strided relayout.
        rows = jax.lax.broadcasted_iota(jnp.int32, (L, T), 0)
        cols = jax.lax.broadcasted_iota(jnp.int32, (L, T), 1)
        sel = (cols == 3 * rows + 1).astype(jnp.float32)
        sx = jnp.dot(sel, xb, preferred_element_type=jnp.float32)  # (L, D)
        nx = _layernorm(sx, nw[...], nb[...]) * max_action
        y = jnp.dot(nx.astype(jnp.bfloat16), hw[...],
                    preferred_element_type=jnp.float32) + hb[...]
        o_ref[0] = jnp.tanh(y).astype(o_ref.dtype)

    vmem_est = (2 * T * D + L * T + 3 * L * D + D * A + 2 * L * A) * 4 * 2
    return pl.pallas_call(
        kernel,
        out_shape=jax.ShapeDtypeStruct((B, L, A), jnp.float32),
        grid=(B,),
        in_specs=[pl.BlockSpec((1, T, D), lambda b: (b, 0, 0)),
                  _rep_spec((1, D)), _rep_spec((1, D)),
                  _rep_spec((D, A)), _rep_spec((1, A))],
        out_specs=pl.BlockSpec((1, L, A), lambda b: (b, 0, 0)),
        compiler_params=_compiler_params(vmem_est),
    )(seq, p['out_norm_w'], p['out_norm_b'], p['head_w'], p['head_b'])


# ----------------------------------------------------------------------------
# Model (glue + kernels)
# ----------------------------------------------------------------------------
def init_params(key, state_dim, action_dim, embedding_dim, num_layers,
                seq_len, episode_len):
    D = embedding_dim
    keys = list(jax.random.split(key, 8 + 4 * num_layers))
    ki = iter(keys)

    def nrm(shape, dtype=jnp.bfloat16):
        # Matmul weight matrices are stored in bf16 (halves DMA bytes + VMEM
        # residency and hits full MXU bf16 rate); biases / LN params stay f32.
        return (0.02 * jax.random.normal(next(ki), shape, jnp.float32)).astype(dtype)

    params = {
        'timestep_emb': nrm((episode_len + seq_len, D), jnp.float32),
        'state_emb_w': nrm((state_dim, D)),   'state_emb_b': jnp.zeros((1, D), jnp.float32),
        'action_emb_w': nrm((action_dim, D)), 'action_emb_b': jnp.zeros((1, D), jnp.float32),
        'return_emb_w': nrm((1, D), jnp.float32), 'return_emb_b': jnp.zeros((1, D), jnp.float32),
        'emb_norm_w': jnp.ones((1, D), jnp.float32), 'emb_norm_b': jnp.zeros((1, D), jnp.float32),
        'out_norm_w': jnp.ones((1, D), jnp.float32), 'out_norm_b': jnp.zeros((1, D), jnp.float32),
        'head_w': nrm((D, action_dim)), 'head_b': jnp.zeros((1, action_dim), jnp.float32),
        'blocks': [],
    }
    for _ in range(num_layers):
        params['blocks'].append({
            'ln1_w': jnp.ones((1, D), jnp.float32), 'ln1_b': jnp.zeros((1, D), jnp.float32),
            'attn_in_w': nrm((D, 3 * D)), 'attn_in_b': jnp.zeros((1, 3 * D), jnp.float32),
            'attn_out_w': nrm((D, D)),    'attn_out_b': jnp.zeros((1, D), jnp.float32),
            'ln2_w': jnp.ones((1, D), jnp.float32), 'ln2_b': jnp.zeros((1, D), jnp.float32),
            'mlp_w1': nrm((D, 4 * D)), 'mlp_b1': jnp.zeros((1, 4 * D), jnp.float32),
            'mlp_w2': nrm((4 * D, D)), 'mlp_b2': jnp.zeros((1, D), jnp.float32),
        })
    return params


def decision_transformer_forward(params, state, action, rtg, time_steps,
                                 num_heads, max_action):
    # TODO(synk): the timestep nn.Embedding gather stays in plain JAX (row
    # gather, no hot-path matmul); key_padding_mask path is not implemented
    # (reference demo passes None).
    time_emb = jnp.take(params['timestep_emb'], time_steps, axis=0)     # (B, L, D)

    # Fused embeddings + interleave + emb_norm (emb_drop: identity, eval mode).
    seq = embed_interleave_pallas(state, action, rtg[..., None], time_emb, params)

    for blk in params['blocks']:
        seq = transformer_block_pallas(seq, blk, num_heads)

    # Fused out_norm + 1::3 state-token gather + max_action scale + head + tanh.
    return output_head_pallas(seq, params, max_action)


# ----------------------------------------------------------------------------
if __name__ == "__main__":
    # Small config consistent with DecisionTransformer.forward
    B, L = 2, 8                 # batch, seq_len
    state_dim, action_dim = 4, 3
    D, num_heads, num_layers = 32, 2, 2
    episode_len = 16
    max_action = 1.0

    key = jax.random.PRNGKey(0)
    k1, k2, k3, k4, kp = jax.random.split(key, 5)
    state = jax.random.normal(k1, (B, L, state_dim), jnp.float32)
    action = jax.random.normal(k2, (B, L, action_dim), jnp.float32)
    rtg = jax.random.normal(k3, (B, L), jnp.float32)
    time_steps = jax.random.randint(k4, (B, L), 0, episode_len)

    params = init_params(kp, state_dim, action_dim, D, num_layers, L, episode_len)

    out = decision_transformer_forward(params, state, action, rtg, time_steps,
                                       num_heads, max_action)
    out = jax.block_until_ready(out)
    assert out.shape == (B, L, action_dim), out.shape
    assert bool(jnp.all(jnp.isfinite(out)))
    print("KERNEL_OK")
</pallas_src>

<mosaic_0001>
module attributes {stable_mosaic.version = 11 : i64} {
  func.func @kernel(%arg0: i32, %arg1: memref<1x8x4xf32, #tpu.memory_space<vmem>>, %arg2: memref<1x8x3xf32, #tpu.memory_space<vmem>>, %arg3: memref<1x8x1xf32, #tpu.memory_space<vmem>>, %arg4: memref<1x8x32xf32, #tpu.memory_space<vmem>>, %arg5: memref<4x32xbf16, #tpu.memory_space<vmem>>, %arg6: memref<1x32xf32, #tpu.memory_space<vmem>>, %arg7: memref<3x32xbf16, #tpu.memory_space<vmem>>, %arg8: memref<1x32xf32, #tpu.memory_space<vmem>>, %arg9: memref<1x32xf32, #tpu.memory_space<vmem>>, %arg10: memref<1x32xf32, #tpu.memory_space<vmem>>, %arg11: memref<1x32xf32, #tpu.memory_space<vmem>>, %arg12: memref<1x32xf32, #tpu.memory_space<vmem>>, %arg13: memref<1x24x32xf32, #tpu.memory_space<vmem>>) attributes {dimension_semantics = [#tpu.dimension_semantics<parallel>], iteration_bounds = array<i64: 2>, scalar_prefetch = 0 : i64, scratch_operands = 0 : i64, tpu.core_type = #tpu.core_type<tc>, window_params = [{transform_indices = @transform_0, window_bounds = array<i64: 1, 8, 4>}, {transform_indices = @transform_1, window_bounds = array<i64: 1, 8, 3>}, {transform_indices = @transform_2, window_bounds = array<i64: 1, 8, 1>}, {transform_indices = @transform_3, window_bounds = array<i64: 1, 8, 32>}, {pipeline_mode = #tpu.pipeline_mode<synchronous>, transform_indices = @transform_4, window_bounds = array<i64: 4, 32>}, {pipeline_mode = #tpu.pipeline_mode<synchronous>, transform_indices = @transform_5, window_bounds = array<i64: 1, 32>}, {pipeline_mode = #tpu.pipeline_mode<synchronous>, transform_indices = @transform_6, window_bounds = array<i64: 3, 32>}, {pipeline_mode = #tpu.pipeline_mode<synchronous>, transform_indices = @transform_7, window_bounds = array<i64: 1, 32>}, {pipeline_mode = #tpu.pipeline_mode<synchronous>, transform_indices = @transform_8, window_bounds = array<i64: 1, 32>}, {pipeline_mode = #tpu.pipeline_mode<synchronous>, transform_indices = @transform_9, window_bounds = array<i64: 1, 32>}, {pipeline_mode = #tpu.pipeline_mode<synchronous>, transform_indices = @transform_10, window_bounds = array<i64: 1, 32>}, {pipeline_mode = #tpu.pipeline_mode<synchronous>, transform_indices = @transform_11, window_bounds = array<i64: 1, 32>}, {transform_indices = @transform_12, window_bounds = array<i64: 1, 24, 32>}]} {
    %c0 = arith.constant 0 : index
    %c0_0 = arith.constant 0 : index
    %c0_1 = arith.constant 0 : index
    %0 = vector.load %arg4[%c0, %c0_0, %c0_1] : memref<1x8x32xf32, #tpu.memory_space<vmem>>, vector<1x8x32xf32>
    %1 = vector.shape_cast %0 : vector<1x8x32xf32> to vector<8x32xf32>
    %c0_2 = arith.constant 0 : index
    %c0_3 = arith.constant 0 : index
    %c0_4 = arith.constant 0 : index
    %2 = vector.load %arg1[%c0_2, %c0_3, %c0_4] : memref<1x8x4xf32, #tpu.memory_space<vmem>>, vector<1x8x4xf32>
    %3 = vector.shape_cast %2 : vector<1x8x4xf32> to vector<8x4xf32>
    %4 = arith.truncf %3 : vector<8x4xf32> to vector<8x4xbf16>
    %c0_5 = arith.constant 0 : index
    %c0_6 = arith.constant 0 : index
    %5 = vector.load %arg5[%c0_5, %c0_6] : memref<4x32xbf16, #tpu.memory_space<vmem>>, vector<4x32xbf16>
    %cst = arith.constant dense<0.000000e+00> : vector<8x32xf32>
    %6 = tpu.matmul %4, %5, %cst {dimension_numbers = #tpu.dot_dimension_numbers<[1], [0], [0], [1], [0, 0, 1, 1], [], []>} : vector<8x4xbf16>, vector<4x32xbf16>, vector<8x32xf32> -> vector<8x32xf32>
    %c0_7 = arith.constant 0 : index
    %c0_8 = arith.constant 0 : index
    %7 = vector.load %arg6[%c0_7, %c0_8] : memref<1x32xf32, #tpu.memory_space<vmem>>, vector<1x32xf32>
    %8 = vector.broadcast %7 : vector<1x32xf32> to vector<8x32xf32>
    %9 = arith.addf %6, %8 : vector<8x32xf32>
    %10 = arith.addf %9, %1 : vector<8x32xf32>
    %c0_9 = arith.constant 0 : index
    %c0_10 = arith.constant 0 : index
    %c0_11 = arith.constant 0 : index
    %11 = vector.load %arg2[%c0_9, %c0_10, %c0_11] : memref<1x8x3xf32, #tpu.memory_space<vmem>>, vector<1x8x3xf32>
    %12 = vector.shape_cast %11 : vector<1x8x3xf32> to vector<8x3xf32>
    %13 = arith.truncf %12 : vector<8x3xf32> to vector<8x3xbf16>
    %c0_12 = arith.constant 0 : index
    %c0_13 = arith.constant 0 : index
    %14 = vector.load %arg7[%c0_12, %c0_13] : memref<3x32xbf16, #tpu.memory_space<vmem>>, vector<3x32xbf16>
    %cst_14 = arith.constant dense<0.000000e+00> : vector<8x32xf32>
    %15 = tpu.matmul %13, %14, %cst_14 {dimension_numbers = #tpu.dot_dimension_numbers<[1], [0], [0], [1], [0, 0, 1, 1], [], []>} : vector<8x3xbf16>, vector<3x32xbf16>, vector<8x32xf32> -> vector<8x32xf32>
    %c0_15 = arith.constant 0 : index
    %c0_16 = arith.constant 0 : index
    %16 = vector.load %arg8[%c0_15, %c0_16] : memref<1x32xf32, #tpu.memory_space<vmem>>, vector<1x32xf32>
    %17 = vector.broadcast %16 : vector<1x32xf32> to vector<8x32xf32>
    %18 = arith.addf %15, %17 : vector<8x32xf32>
    %19 = arith.addf %18, %1 : vector<8x32xf32>
    %c0_17 = arith.constant 0 : index
    %c0_18 = arith.constant 0 : index
    %c0_19 = arith.constant 0 : index
    %20 = vector.load %arg3[%c0_17, %c0_18, %c0_19] : memref<1x8x1xf32, #tpu.memory_space<vmem>>, vector<1x8x1xf32>
    %21 = vector.shape_cast %20 : vector<1x8x1xf32> to vector<8x1xf32>
    %c0_20 = arith.constant 0 : index
    %c0_21 = arith.constant 0 : index
    %22 = vector.load %arg9[%c0_20, %c0_21] : memref<1x32xf32, #tpu.memory_space<vmem>>, vector<1x32xf32>
    %23 = vector.broadcast %21 : vector<8x1xf32> to vector<8x32xf32>
    %24 = vector.broadcast %22 : vector<1x32xf32> to vector<8x32xf32>
    %25 = arith.mulf %23, %24 : vector<8x32xf32>
    %c0_22 = arith.constant 0 : index
    %c0_23 = arith.constant 0 : index
    %26 = vector.load %arg10[%c0_22, %c0_23] : memref<1x32xf32, #tpu.memory_space<vmem>>, vector<1x32xf32>
    %27 = vector.broadcast %26 : vector<1x32xf32> to vector<8x32xf32>
    %28 = arith.addf %25, %27 : vector<8x32xf32>
    %29 = arith.addf %28, %1 : vector<8x32xf32>
    %c0_24 = arith.constant 0 : index
    %c0_25 = arith.constant 0 : index
    %30 = vector.load %arg11[%c0_24, %c0_25] : memref<1x32xf32, #tpu.memory_space<vmem>>, vector<1x32xf32>
    %c0_26 = arith.constant 0 : index
    %c0_27 = arith.constant 0 : index
    %31 = vector.load %arg12[%c0_26, %c0_27] : memref<1x32xf32, #tpu.memory_space<vmem>>, vector<1x32xf32>
    %cst_28 = arith.constant dense<0.000000e+00> : vector<8xf32>
    %32 = vector.multi_reduction <add>, %10, %cst_28 [1] : vector<8x32xf32> to vector<8xf32>
    %33 = vector.shape_cast %32 : vector<8xf32> to vector<8x1xf32>
    %cst_29 = arith.constant 3.200000e+01 : f32
    %34 = vector.broadcast %cst_29 : f32 to vector<8x1xf32>
    %35 = arith.divf %33, %34 : vector<8x1xf32>
    %36 = vector.broadcast %35 : vector<8x1xf32> to vector<8x32xf32>
    %37 = arith.subf %10, %36 : vector<8x32xf32>
    %38 = arith.mulf %37, %37 : vector<8x32xf32>
    %cst_30 = arith.constant dense<0.000000e+00> : vector<8xf32>
    %39 = vector.multi_reduction <add>, %38, %cst_30 [1] : vector<8x32xf32> to vector<8xf32>
    %40 = vector.shape_cast %39 : vector<8xf32> to vector<8x1xf32>
    %cst_31 = arith.constant 3.200000e+01 : f32
    %41 = vector.broadcast %cst_31 : f32 to vector<8x1xf32>
    %42 = arith.divf %40, %41 : vector<8x1xf32>
    %cst_32 = arith.constant 9.99999974E-6 : f32
    %43 = vector.broadcast %cst_32 : f32 to vector<8x1xf32>
    %44 = arith.addf %42, %43 : vector<8x1xf32>
    %45 = math.rsqrt %44 : vector<8x1xf32>
    %46 = vector.broadcast %45 : vector<8x1xf32> to vector<8x32xf32>
    %47 = arith.mulf %37, %46 : vector<8x32xf32>
    %48 = vector.broadcast %30 : vector<1x32xf32> to vector<8x32xf32>
    %49 = arith.mulf %47, %48 : vector<8x32xf32>
    %50 = vector.broadcast %31 : vector<1x32xf32> to vector<8x32xf32>
    %51 = arith.addf %49, %50 : vector<8x32xf32>
    %c0_33 = arith.constant 0 : index
    %c0_34 = arith.constant 0 : index
    %52 = vector.load %arg11[%c0_33, %c0_34] : memref<1x32xf32, #tpu.memory_space<vmem>>, vector<1x32xf32>
    %c0_35 = arith.constant 0 : index
    %c0_36 = arith.constant 0 : index
    %53 = vector.load %arg12[%c0_35, %c0_36] : memref<1x32xf32, #tpu.memory_space<vmem>>, vector<1x32xf32>
    %cst_37 = arith.constant dense<0.000000e+00> : vector<8xf32>
    %54 = vector.multi_reduction <add>, %19, %cst_37 [1] : vector<8x32xf32> to vector<8xf32>
    %55 = vector.shape_cast %54 : vector<8xf32> to vector<8x1xf32>
    %cst_38 = arith.constant 3.200000e+01 : f32
    %56 = vector.broadcast %cst_38 : f32 to vector<8x1xf32>
    %57 = arith.divf %55, %56 : vector<8x1xf32>
    %58 = vector.broadcast %57 : vector<8x1xf32> to vector<8x32xf32>
    %59 = arith.subf %19, %58 : vector<8x32xf32>
    %60 = arith.mulf %59, %59 : vector<8x32xf32>
    %cst_39 = arith.constant dense<0.000000e+00> : vector<8xf32>
    %61 = vector.multi_reduction <add>, %60, %cst_39 [1] : vector<8x32xf32> to vector<8xf32>
    %62 = vector.shape_cast %61 : vector<8xf32> to vector<8x1xf32>
    %cst_40 = arith.constant 3.200000e+01 : f32
    %63 = vector.broadcast %cst_40 : f32 to vector<8x1xf32>
    %64 = arith.divf %62, %63 : vector<8x1xf32>
    %cst_41 = arith.constant 9.99999974E-6 : f32
    %65 = vector.broadcast %cst_41 : f32 to vector<8x1xf32>
    %66 = arith.addf %64, %65 : vector<8x1xf32>
    %67 = math.rsqrt %66 : vector<8x1xf32>
    %68 = vector.broadcast %67 : vector<8x1xf32> to vector<8x32xf32>
    %69 = arith.mulf %59, %68 : vector<8x32xf32>
    %70 = vector.broadcast %52 : vector<1x32xf32> to vector<8x32xf32>
    %71 = arith.mulf %69, %70 : vector<8x32xf32>
    %72 = vector.broadcast %53 : vector<1x32xf32> to vector<8x32xf32>
    %73 = arith.addf %71, %72 : vector<8x32xf32>
    %c0_42 = arith.constant 0 : index
    %c0_43 = arith.constant 0 : index
    %74 = vector.load %arg11[%c0_42, %c0_43] : memref<1x32xf32, #tpu.memory_space<vmem>>, vector<1x32xf32>
    %c0_44 = arith.constant 0 : index
    %c0_45 = arith.constant 0 : index
    %75 = vector.load %arg12[%c0_44, %c0_45] : memref<1x32xf32, #tpu.memory_space<vmem>>, vector<1x32xf32>
    %cst_46 = arith.constant dense<0.000000e+00> : vector<8xf32>
    %76 = vector.multi_reduction <add>, %29, %cst_46 [1] : vector<8x32xf32> to vector<8xf32>
    %77 = vector.shape_cast %76 : vector<8xf32> to vector<8x1xf32>
    %cst_47 = arith.constant 3.200000e+01 : f32
    %78 = vector.broadcast %cst_47 : f32 to vector<8x1xf32>
    %79 = arith.divf %77, %78 : vector<8x1xf32>
    %80 = vector.broadcast %79 : vector<8x1xf32> to vector<8x32xf32>
    %81 = arith.subf %29, %80 : vector<8x32xf32>
    %82 = arith.mulf %81, %81 : vector<8x32xf32>
    %cst_48 = arith.constant dense<0.000000e+00> : vector<8xf32>
    %83 = vector.multi_reduction <add>, %82, %cst_48 [1] : vector<8x32xf32> to vector<8xf32>
    %84 = vector.shape_cast %83 : vector<8xf32> to vector<8x1xf32>
    %cst_49 = arith.constant 3.200000e+01 : f32
    %85 = vector.broadcast %cst_49 : f32 to vector<8x1xf32>
    %86 = arith.divf %84, %85 : vector<8x1xf32>
    %cst_50 = arith.constant 9.99999974E-6 : f32
    %87 = vector.broadcast %cst_50 : f32 to vector<8x1xf32>
    %88 = arith.addf %86, %87 : vector<8x1xf32>
    %89 = math.rsqrt %88 : vector<8x1xf32>
    %90 = vector.broadcast %89 : vector<8x1xf32> to vector<8x32xf32>
    %91 = arith.mulf %81, %90 : vector<8x32xf32>
    %92 = vector.broadcast %74 : vector<1x32xf32> to vector<8x32xf32>
    %93 = arith.mulf %91, %92 : vector<8x32xf32>
    %94 = vector.broadcast %75 : vector<1x32xf32> to vector<8x32xf32>
    %95 = arith.addf %93, %94 : vector<8x32xf32>
    %96 = tpu.iota {dimensions = array<i32: 0>} : vector<24x8xi32>
    %97 = tpu.iota {dimensions = array<i32: 1>} : vector<24x8xi32>
    %c3_i32 = arith.constant 3 : i32
    %98 = vector.broadcast %c3_i32 : i32 to vector<24x8xi32>
    %99 = arith.muli %98, %97 : vector<24x8xi32>
    %100 = arith.cmpi eq, %96, %99 : vector<24x8xi32>
    %101 = arith.extui %100 : vector<24x8xi1> to vector<24x8xi32>
    %102 = arith.sitofp %101 : vector<24x8xi32> to vector<24x8xf32>
    %c3_i32_51 = arith.constant 3 : i32
    %103 = vector.broadcast %c3_i32_51 : i32 to vector<24x8xi32>
    %104 = arith.muli %103, %97 : vector<24x8xi32>
    %c1_i32 = arith.constant 1 : i32
    %105 = vector.broadcast %c1_i32 : i32 to vector<24x8xi32>
    %106 = arith.addi %104, %105 : vector<24x8xi32>
    %107 = arith.cmpi eq, %96, %106 : vector<24x8xi32>
    %108 = arith.extui %107 : vector<24x8xi1> to vector<24x8xi32>
    %109 = arith.sitofp %108 : vector<24x8xi32> to vector<24x8xf32>
    %c3_i32_52 = arith.constant 3 : i32
    %110 = vector.broadcast %c3_i32_52 : i32 to vector<24x8xi32>
    %111 = arith.muli %110, %97 : vector<24x8xi32>
    %c2_i32 = arith.constant 2 : i32
    %112 = vector.broadcast %c2_i32 : i32 to vector<24x8xi32>
    %113 = arith.addi %111, %112 : vector<24x8xi32>
    %114 = arith.cmpi eq, %96, %113 : vector<24x8xi32>
    %115 = arith.extui %114 : vector<24x8xi1> to vector<24x8xi32>
    %116 = arith.sitofp %115 : vector<24x8xi32> to vector<24x8xf32>
    %cst_53 = arith.constant dense<0.000000e+00> : vector<24x32xf32>
    %117 = tpu.matmul %102, %95, %cst_53 {dimension_numbers = #tpu.dot_dimension_numbers<[1], [0], [0], [1], [0, 0, 1, 1], [], []>} : vector<24x8xf32>, vector<8x32xf32>, vector<24x32xf32> -> vector<24x32xf32>
    %cst_54 = arith.constant dense<0.000000e+00> : vector<24x32xf32>
    %118 = tpu.matmul %109, %51, %cst_54 {dimension_numbers = #tpu.dot_dimension_numbers<[1], [0], [0], [1], [0, 0, 1, 1], [], []>} : vector<24x8xf32>, vector<8x32xf32>, vector<24x32xf32> -> vector<24x32xf32>
    %119 = arith.addf %117, %118 : vector<24x32xf32>
    %cst_55 = arith.constant dense<0.000000e+00> : vector<24x32xf32>
    %120 = tpu.matmul %116, %73, %cst_55 {dimension_numbers = #tpu.dot_dimension_numbers<[1], [0], [0], [1], [0, 0, 1, 1], [], []>} : vector<24x8xf32>, vector<8x32xf32>, vector<24x32xf32> -> vector<24x32xf32>
    %121 = arith.addf %119, %120 : vector<24x32xf32>
    %c0_56 = arith.constant 0 : index
    %c0_57 = arith.constant 0 : index
    %c0_58 = arith.constant 0 : index
    %122 = vector.load %arg13[%c0_56, %c0_57, %c0_58] : memref<1x24x32xf32, #tpu.memory_space<vmem>>, vector<1x24x32xf32>
    %123 = vector.shape_cast %122 : vector<1x24x32xf32> to vector<24x32xf32>
    %124 = vector.shape_cast %121 : vector<24x32xf32> to vector<1x24x32xf32>
    tpu.vector_store %arg13[%c0_56, %c0_57, %c0_58], %124 {strides = array<i32>} : memref<1x24x32xf32, #tpu.memory_space<vmem>>, vector<1x24x32xf32>,
    return
  }
  func.func @transform_0(%arg0: i32) -> (i32, i32, i32) {
    %c0_i32 = arith.constant 0 : i32
    %c0_i32_0 = arith.constant 0 : i32
    %c0_i32_1 = arith.constant 0 : i32
    return %arg0, %c0_i32, %c0_i32_0 : i32, i32, i32
  }
  func.func @transform_1(%arg0: i32) -> (i32, i32, i32) {
    %c0_i32 = arith.constant 0 : i32
    %c0_i32_0 = arith.constant 0 : i32
    %c0_i32_1 = arith.constant 0 : i32
    return %arg0, %c0_i32, %c0_i32_0 : i32, i32, i32
  }
  func.func @transform_2(%arg0: i32) -> (i32, i32, i32) {
    %c0_i32 = arith.constant 0 : i32
    %c0_i32_0 = arith.constant 0 : i32
    %c0_i32_1 = arith.constant 0 : i32
    return %arg0, %c0_i32, %c0_i32_0 : i32, i32, i32
  }
  func.func @transform_3(%arg0: i32) -> (i32, i32, i32) {
    %c0_i32 = arith.constant 0 : i32
    %c0_i32_0 = arith.constant 0 : i32
    %c0_i32_1 = arith.constant 0 : i32
    return %arg0, %c0_i32, %c0_i32_0 : i32, i32, i32
  }
  func.func @transform_4(%arg0: i32) -> (i32, i32) {
    %c0_i32 = arith.constant 0 : i32
    %c0_i32_0 = arith.constant 0 : i32
    %c0_i32_1 = arith.constant 0 : i32
    return %c0_i32, %c0_i32_0 : i32, i32
  }
  func.func @transform_5(%arg0: i32) -> (i32, i32) {
    %c0_i32 = arith.constant 0 : i32
    %c0_i32_0 = arith.constant 0 : i32
    %c0_i32_1 = arith.constant 0 : i32
    return %c0_i32, %c0_i32_0 : i32, i32
  }
  func.func @transform_6(%arg0: i32) -> (i32, i32) {
    %c0_i32 = arith.constant 0 : i32
    %c0_i32_0 = arith.constant 0 : i32
    %c0_i32_1 = arith.constant 0 : i32
    return %c0_i32, %c0_i32_0 : i32, i32
  }
  func.func @transform_7(%arg0: i32) -> (i32, i32) {
    %c0_i32 = arith.constant 0 : i32
    %c0_i32_0 = arith.constant 0 : i32
    %c0_i32_1 = arith.constant 0 : i32
    return %c0_i32, %c0_i32_0 : i32, i32
  }
  func.func @transform_8(%arg0: i32) -> (i32, i32) {
    %c0_i32 = arith.constant 0 : i32
    %c0_i32_0 = arith.constant 0 : i32
    %c0_i32_1 = arith.constant 0 : i32
    return %c0_i32, %c0_i32_0 : i32, i32
  }
  func.func @transform_9(%arg0: i32) -> (i32, i32) {
    %c0_i32 = arith.constant 0 : i32
    %c0_i32_0 = arith.constant 0 : i32
    %c0_i32_1 = arith.constant 0 : i32
    return %c0_i32, %c0_i32_0 : i32, i32
  }
  func.func @transform_10(%arg0: i32) -> (i32, i32) {
    %c0_i32 = arith.constant 0 : i32
    %c0_i32_0 = arith.constant 0 : i32
    %c0_i32_1 = arith.constant 0 : i32
    return %c0_i32, %c0_i32_0 : i32, i32
  }
  func.func @transform_11(%arg0: i32) -> (i32, i32) {
    %c0_i32 = arith.constant 0 : i32
    %c0_i32_0 = arith.constant 0 : i32
    %c0_i32_1 = arith.constant 0 : i32
    return %c0_i32, %c0_i32_0 : i32, i32
  }
  func.func @transform_12(%arg0: i32) -> (i32, i32, i32) {
    %c0_i32 = arith.constant 0 : i32
    %c0_i32_0 = arith.constant 0 : i32
    %c0_i32_1 = arith.constant 0 : i32
    return %arg0, %c0_i32, %c0_i32_0 : i32, i32, i32
  }
}

</mosaic_0001>

<llo_original>
// kernel: tpu_custom_call.1
$region0: #{tpu_custom_call.1}
  #allocation0 [shape = 'u32[]', space=smem, size = 0x4, offset = 0x4, fixed_abs, tag = 'smem constant byte address 0x4 - core index']
  #allocation1 [shape = 'u32[144,128]{1,0:T(1,128)}', space=vmem, size = 0x12000, scoped, tag = 'internal scratch']
  %s0 = inlined_call_operand.vmem [shape: f32[2,8,4], index: 0, kind: input, shape index: {}]
  %s1 = inlined_call_operand.vmem [shape: f32[2,8,3], index: 1, kind: input, shape index: {}]
  %s2 = inlined_call_operand.vmem [shape: f32[2,8,1], index: 2, kind: input, shape index: {}]
  %s3 = inlined_call_operand.vmem [shape: f32[2,8,32], index: 3, kind: input, shape index: {}]
  %s4 = inlined_call_operand.vmem [shape: bf16[4,32], index: 4, kind: input, shape index: {}]
  %s5 = inlined_call_operand.vmem [shape: f32[1,32], index: 5, kind: input, shape index: {}]
  %s6 = inlined_call_operand.vmem [shape: bf16[3,32], index: 6, kind: input, shape index: {}]
  %s7 = inlined_call_operand.vmem [shape: f32[1,32], index: 7, kind: input, shape index: {}]
  %s8 = inlined_call_operand.vmem [shape: f32[1,32], index: 8, kind: input, shape index: {}]
  %s9 = inlined_call_operand.vmem [shape: f32[1,32], index: 9, kind: input, shape index: {}]
  %s10 = inlined_call_operand.vmem [shape: f32[1,32], index: 10, kind: input, shape index: {}]
  %s11 = inlined_call_operand.vmem [shape: f32[1,32], index: 11, kind: input, shape index: {}]
  %s12 = inlined_call_operand.hbm [shape: f32[2,24,32], index: 12, kind: output, shape index: {}]
  %s13 = sld [smem:[#allocation0]]
  $region81: #{tpu_custom_call.1} parent=0
    _
  %s15 = ssub.s32 1, %s13
  %s16 = scalar_select 0, %s15, %s13
  $region1: #{tpu_custom_call.1} parent=0
    #allocation2 [shape = 'u8[24576]{0}', space=vmem, size = 0x6000, scoped, tag = 'output window, operand 0']
    #allocation3 [shape = 's32[2]{0}', space=sflag, size = 0x8, scoped, tag = 'scoped memory for tpu_custom_call.1']
    %17 = vsyncpa [#allocation3], 0
    %s18 = scalar_lea.sflag [#allocation3], 1
    %19 = vsyncpa %s18, 0
    loop: start=0, step=1, limit=4
    $region2: #{tpu_custom_call.1} parent=1 // loop_pre_header
      _
    $region3: #{tpu_custom_call.1} parent=1 // loop_header
      %s21 = sphi 0, %s25
      %p22 = scmp.ge.s32.totalorder %s21, 4
      %s31 = sphi 0, %s33
      %s34 = sphi 0, %s31
      %s35 = sphi 0, %s34
      %s51 = sphi 0, %s35
      %s57 = sphi 0, %s59
      %s60 = sphi 0, %s57
      %s61 = sphi 0, %s60
      %s77 = sphi 0, %s61
      %s83 = sphi 0, %s85
      %s86 = sphi 0, %s83
      %s87 = sphi 0, %s86
      %s103 = sphi 0, %s87
      %s109 = sphi 0, %s111
      %s112 = sphi 0, %s109
      %s113 = sphi 0, %s112
      %s129 = sphi 0, %s113
      %s133 = sphi 0, %s133
      %s135 = sphi 0, %s133
      %s136 = sphi 0, %s135
      %s150 = sphi 0, %s136
      %s154 = sphi 0, %s154
      %s156 = sphi 0, %s154
      %s157 = sphi 0, %s156
      %s171 = sphi 0, %s157
      %s175 = sphi 0, %s175
      %s177 = sphi 0, %s175
      %s178 = sphi 0, %s177
      %s192 = sphi 0, %s178
      %s196 = sphi 0, %s196
      %s198 = sphi 0, %s196
      %s199 = sphi 0, %s198
      %s213 = sphi 0, %s199
      %s217 = sphi 0, %s217
      %s219 = sphi 0, %s217
      %s220 = sphi 0, %s219
      %s234 = sphi 0, %s220
      %s238 = sphi 0, %s238
      %s240 = sphi 0, %s238
      %s241 = sphi 0, %s240
      %s255 = sphi 0, %s241
      %s259 = sphi 0, %s259
      %s261 = sphi 0, %s259
      %s262 = sphi 0, %s261
      %s276 = sphi 0, %s262
      %s280 = sphi 0, %s280
      %s282 = sphi 0, %s280
      %s283 = sphi 0, %s282
      %s297 = sphi 0, %s283
      %s303 = sphi 0, %s305
      %s306 = sphi 0, %s303
      %s307 = sphi 0, %s306
      %s323 = sphi 0, %s307
    $region4: #{tpu_custom_call.1} parent=1 // loop_header_branch
      %24 = sbr.rel (%p22) target = $region8
    $region5: #{tpu_custom_call.1} parent=1 // loop_body
      %s26 = ssub.s32 %s21, 1
      %s27 = ssub.s32 %s21, 2
      %s28 = sadd.s32 %s21, 1
      %s29 = ssub.s32 %s21, %s28
      %p30 = scmp.eq.s32.totalorder %s29, 0
      %s32 = sadd.s32 %s31, 1
      %s33 = scalar_select %p30, %s31, %s32
      %p36 = pneg %p30
      %p37 = scmp.eq.s32.totalorder %s21, 1
      %p38 = por %p36, %p37
      %p39 = scmp.ne.s32.totalorder %s31, %s34
      %p40 = scmp.eq.s32.totalorder %s21, 0
      %p41 = por %p39, %p40
      %p42 = scmp.ne.s32.totalorder %s31, %s34
      %p43 = scmp.eq.s32.totalorder %s26, 1
      %p44 = por %p42, %p43
      %p45 = scmp.ne.s32.totalorder %s34, %s35
      %p46 = scmp.eq.s32.totalorder %s26, 0
      %p47 = por %p45, %p46
      %p48 = scmp.ne.s32.totalorder %s34, %s35
      %p49 = scmp.eq.s32.totalorder %s27, 1
      %p50 = por %p48, %p49
      %p52 = scmp.ne.s32.totalorder %s35, %s51
      %p53 = scmp.eq.s32.totalorder %s27, 0
      %p54 = por %p52, %p53
      %s55 = ssub.s32 %s21, %s28
      %p56 = scmp.eq.s32.totalorder %s55, 0
      %s58 = sadd.s32 %s57, 1
      %s59 = scalar_select %p56, %s57, %s58
      %p62 = pneg %p56
      %p63 = scmp.eq.s32.totalorder %s21, 1
      %p64 = por %p62, %p63
      %p65 = scmp.ne.s32.totalorder %s57, %s60
      %p66 = scmp.eq.s32.totalorder %s21, 0
      %p67 = por %p65, %p66
      %p68 = scmp.ne.s32.totalorder %s57, %s60
      %p69 = scmp.eq.s32.totalorder %s26, 1
      %p70 = por %p68, %p69
      %p71 = scmp.ne.s32.totalorder %s60, %s61
      %p72 = scmp.eq.s32.totalorder %s26, 0
      %p73 = por %p71, %p72
      %p74 = scmp.ne.s32.totalorder %s60, %s61
      %p75 = scmp.eq.s32.totalorder %s27, 1
      %p76 = por %p74, %p75
      %p78 = scmp.ne.s32.totalorder %s61, %s77
      %p79 = scmp.eq.s32.totalorder %s27, 0
      %p80 = por %p78, %p79
      %s81 = ssub.s32 %s21, %s28
      %p82 = scmp.eq.s32.totalorder %s81, 0
      %s84 = sadd.s32 %s83, 1
      %s85 = scalar_select %p82, %s83, %s84
      %p88 = pneg %p82
      %p89 = scmp.eq.s32.totalorder %s21, 1
      %p90 = por %p88, %p89
      %p91 = scmp.ne.s32.totalorder %s83, %s86
      %p92 = scmp.eq.s32.totalorder %s21, 0
      %p93 = por %p91, %p92
      %p94 = scmp.ne.s32.totalorder %s83, %s86
      %p95 = scmp.eq.s32.totalorder %s26, 1
      %p96 = por %p94, %p95
      %p97 = scmp.ne.s32.totalorder %s86, %s87
      %p98 = scmp.eq.s32.totalorder %s26, 0
      %p99 = por %p97, %p98
      %p100 = scmp.ne.s32.totalorder %s86, %s87
      %p101 = scmp.eq.s32.totalorder %s27, 1
      %p102 = por %p100, %p101
      %p104 = scmp.ne.s32.totalorder %s87, %s103
      %p105 = scmp.eq.s32.totalorder %s27, 0
      %p106 = por %p104, %p105
      %s107 = ssub.s32 %s21, %s28
      %p108 = scmp.eq.s32.totalorder %s107, 0
      %s110 = sadd.s32 %s109, 1
      %s111 = scalar_select %p108, %s109, %s110
      %p114 = pneg %p108
      %p115 = scmp.eq.s32.totalorder %s21, 1
      %p116 = por %p114, %p115
      %p117 = scmp.ne.s32.totalorder %s109, %s112
      %p118 = scmp.eq.s32.totalorder %s21, 0
      %p119 = por %p117, %p118
      %p120 = scmp.ne.s32.totalorder %s109, %s112
      %p121 = scmp.eq.s32.totalorder %s26, 1
      %p122 = por %p120, %p121
      %p123 = scmp.ne.s32.totalorder %s112, %s113
      %p124 = scmp.eq.s32.totalorder %s26, 0
      %p125 = por %p123, %p124
      %p126 = scmp.ne.s32.totalorder %s112, %s113
      %p127 = scmp.eq.s32.totalorder %s27, 1
      %p128 = por %p126, %p127
      %p130 = scmp.ne.s32.totalorder %s113, %s129
      %p131 = scmp.eq.s32.totalorder %s27, 0
      %p132 = por %p130, %p131
      %s134 = sadd.s32 %s133, 1
      %p137 = scmp.eq.s32.totalorder %s21, 1
      %p138 = scmp.ne.s32.totalorder %s133, %s135
      %p139 = scmp.eq.s32.totalorder %s21, 0
      %p140 = por %p138, %p139
      %p141 = scmp.ne.s32.totalorder %s133, %s135
      %p142 = scmp.eq.s32.totalorder %s26, 1
      %p143 = por %p141, %p142
      %p144 = scmp.ne.s32.totalorder %s135, %s136
      %p145 = scmp.eq.s32.totalorder %s26, 0
      %p146 = por %p144, %p145
      %p147 = scmp.ne.s32.totalorder %s135, %s136
      %p148 = scmp.eq.s32.totalorder %s27, 1
      %p149 = por %p147, %p148
      %p151 = scmp.ne.s32.totalorder %s136, %s150
      %p152 = scmp.eq.s32.totalorder %s27, 0
      %p153 = por %p151, %p152
      %s155 = sadd.s32 %s154, 1
      %p158 = scmp.eq.s32.totalorder %s21, 1
      %p159 = scmp.ne.s32.totalorder %s154, %s156
      %p160 = scmp.eq.s32.totalorder %s21, 0
      %p161 = por %p159, %p160
      %p162 = scmp.ne.s32.totalorder %s154, %s156
      %p163 = scmp.eq.s32.totalorder %s26, 1
      %p164 = por %p162, %p163
      %p165 = scmp.ne.s32.totalorder %s156, %s157
      %p166 = scmp.eq.s32.totalorder %s26, 0
      %p167 = por %p165, %p166
      %p168 = scmp.ne.s32.totalorder %s156, %s157
      %p169 = scmp.eq.s32.totalorder %s27, 1
      %p170 = por %p168, %p169
      %p172 = scmp.ne.s32.totalorder %s157, %s171
      %p173 = scmp.eq.s32.totalorder %s27, 0
      %p174 = por %p172, %p173
      %s176 = sadd.s32 %s175, 1
      %p179 = scmp.eq.s32.totalorder %s21, 1
      %p180 = scmp.ne.s32.totalorder %s175, %s177
      %p181 = scmp.eq.s32.totalorder %s21, 0
      %p182 = por %p180, %p181
      %p183 = scmp.ne.s32.totalorder %s175, %s177
      %p184 = scmp.eq.s32.totalorder %s26, 1
      %p185 = por %p183, %p184
      %p186 = scmp.ne.s32.totalorder %s177, %s178
      %p187 = scmp.eq.s32.totalorder %s26, 0
      %p188 = por %p186, %p187
      %p189 = scmp.ne.s32.totalorder %s177, %s178
      %p190 = scmp.eq.s32.totalorder %s27, 1
      %p191 = por %p189, %p190
      %p193 = scmp.ne.s32.totalorder %s178, %s192
      %p194 = scmp.eq.s32.totalorder %s27, 0
      %p195 = por %p193, %p194
      %s197 = sadd.s32 %s196, 1
      %p200 = scmp.eq.s32.totalorder %s21, 1
      %p201 = scmp.ne.s32.totalorder %s196, %s198
      %p202 = scmp.eq.s32.totalorder %s21, 0
      %p203 = por %p201, %p202
      %p204 = scmp.ne.s32.totalorder %s196, %s198
      %p205 = scmp.eq.s32.totalorder %s26, 1
      %p206 = por %p204, %p205
      %p207 = scmp.ne.s32.totalorder %s198, %s199
      %p208 = scmp.eq.s32.totalorder %s26, 0
      %p209 = por %p207, %p208
      %p210 = scmp.ne.s32.totalorder %s198, %s199
      %p211 = scmp.eq.s32.totalorder %s27, 1
      %p212 = por %p210, %p211
      %p214 = scmp.ne.s32.totalorder %s199, %s213
      %p215 = scmp.eq.s32.totalorder %s27, 0
      %p216 = por %p214, %p215
      %s218 = sadd.s32 %s217, 1
      %p221 = scmp.eq.s32.totalorder %s21, 1
      %p222 = scmp.ne.s32.totalorder %s217, %s219
      %p223 = scmp.eq.s32.totalorder %s21, 0
      %p224 = por %p222, %p223
      %p225 = scmp.ne.s32.totalorder %s217, %s219
      %p226 = scmp.eq.s32.totalorder %s26, 1
      %p227 = por %p225, %p226
      %p228 = scmp.ne.s32.totalorder %s219, %s220
      %p229 = scmp.eq.s32.totalorder %s26, 0
      %p230 = por %p228, %p229
      %p231 = scmp.ne.s32.totalorder %s219, %s220
      %p232 = scmp.eq.s32.totalorder %s27, 1
      %p233 = por %p231, %p232
      %p235 = scmp.ne.s32.totalorder %s220, %s234
      %p236 = scmp.eq.s32.totalorder %s27, 0
      %p237 = por %p235, %p236
      %s239 = sadd.s32 %s238, 1
      %p242 = scmp.eq.s32.totalorder %s21, 1
      %p243 = scmp.ne.s32.totalorder %s238, %s240
      %p244 = scmp.eq.s32.totalorder %s21, 0
      %p245 = por %p243, %p244
      %p246 = scmp.ne.s32.totalorder %s238, %s240
      %p247 = scmp.eq.s32.totalorder %s26, 1
      %p248 = por %p246, %p247
      %p249 = scmp.ne.s32.totalorder %s240, %s241
      %p250 = scmp.eq.s32.totalorder %s26, 0
      %p251 = por %p249, %p250
      %p252 = scmp.ne.s32.totalorder %s240, %s241
      %p253 = scmp.eq.s32.totalorder %s27, 1
      %p254 = por %p252, %p253
      %p256 = scmp.ne.s32.totalorder %s241, %s255
      %p257 = scmp.eq.s32.totalorder %s27, 0
      %p258 = por %p256, %p257
      %s260 = sadd.s32 %s259, 1
      %p263 = scmp.eq.s32.totalorder %s21, 1
      %p264 = scmp.ne.s32.totalorder %s259, %s261
      %p265 = scmp.eq.s32.totalorder %s21, 0
      %p266 = por %p264, %p265
      %p267 = scmp.ne.s32.totalorder %s259, %s261
      %p268 = scmp.eq.s32.totalorder %s26, 1
      %p269 = por %p267, %p268
      %p270 = scmp.ne.s32.totalorder %s261, %s262
      %p271 = scmp.eq.s32.totalorder %s26, 0
      %p272 = por %p270, %p271
      %p273 = scmp.ne.s32.totalorder %s261, %s262
      %p274 = scmp.eq.s32.totalorder %s27, 1
      %p275 = por %p273, %p274
      %p277 = scmp.ne.s32.totalorder %s262, %s276
      %p278 = scmp.eq.s32.totalorder %s27, 0
      %p279 = por %p277, %p278
      %s281 = sadd.s32 %s280, 1
      %p284 = scmp.eq.s32.totalorder %s21, 1
      %p285 = scmp.ne.s32.totalorder %s280, %s282
      %p286 = scmp.eq.s32.totalorder %s21, 0
      %p287 = por %p285, %p286
      %p288 = scmp.ne.s32.totalorder %s280, %s282
      %p289 = scmp.eq.s32.totalorder %s26, 1
      %p290 = por %p288, %p289
      %p291 = scmp.ne.s32.totalorder %s282, %s283
      %p292 = scmp.eq.s32.totalorder %s26, 0
      %p293 = por %p291, %p292
      %p294 = scmp.ne.s32.totalorder %s282, %s283
      %p295 = scmp.eq.s32.totalorder %s27, 1
      %p296 = por %p294, %p295
      %p298 = scmp.ne.s32.totalorder %s283, %s297
      %p299 = scmp.eq.s32.totalorder %s27, 0
      %p300 = por %p298, %p299
      %s301 = ssub.s32 %s21, %s28
      %p302 = scmp.eq.s32.totalorder %s301, 0
      %s304 = sadd.s32 %s303, 1
      %s305 = scalar_select %p302, %s303, %s304
      %p308 = pneg %p302
      %p309 = scmp.eq.s32.totalorder %s21, 1
      %p310 = por %p308, %p309
      %p311 = scmp.ne.s32.totalorder %s303, %s306
      %p312 = scmp.eq.s32.totalorder %s21, 0
      %p313 = por %p311, %p312
      %p314 = scmp.ne.s32.totalorder %s303, %s306
      %p315 = scmp.eq.s32.totalorder %s26, 1
      %p316 = por %p314, %p315
      %p317 = scmp.ne.s32.totalorder %s306, %s307
      %p318 = scmp.eq.s32.totalorder %s26, 0
      %p319 = por %p317, %p318
      %p320 = scmp.ne.s32.totalorder %s306, %s307
      %p321 = scmp.eq.s32.totalorder %s27, 1
      %p322 = por %p320, %p321
      %p324 = scmp.ne.s32.totalorder %s307, %s323
      %p325 = scmp.eq.s32.totalorder %s27, 0
      %p326 = por %p324, %p325
      %p327 = scmp.le.s32.totalorder 1, %s21
      %p328 = scmp.lt.s32.totalorder %s21, 3
      %p329 = pnand %p327, %p328
      %p330 = pneg %p329
      // Predicated region
      $region9: #{tpu_custom_call.1} parent=5 // pred_check
        _
      $region10: #{tpu_custom_call.1} parent=5 // pred_check_branch
        %332 = sbr.rel (%p329) target = $region12
      $region11: #{tpu_custom_call.1} parent=5 // pred_region
        %s333 = ssub.s32 %s21, 1
        // Predicated region
        $region13: #{tpu_custom_call.1} parent=11 // pred_check
          %p334 = pneg %p146
        $region14: #{tpu_custom_call.1} parent=11 // pred_check_branch
          %336 = sbr.rel (%p334) target = $region16
        $region15: #{tpu_custom_call.1} parent=11 // pred_region
          _
        $region16: #{tpu_custom_call.1} parent=11 // pred_fallthru
          _
        // Predicated region
        $region17: #{tpu_custom_call.1} parent=11 // pred_check
          %p337 = pneg %p167
        $region18: #{tpu_custom_call.1} parent=11 // pred_check_branch
          %339 = sbr.rel (%p337) target = $region20
        $region19: #{tpu_custom_call.1} parent=11 // pred_region
          _
        $region20: #{tpu_custom_call.1} parent=11 // pred_fallthru
          _
        // Predicated region
        $region21: #{tpu_custom_call.1} parent=11 // pred_check
          %p340 = pneg %p188
        $region22: #{tpu_custom_call.1} parent=11 // pred_check_branch
          %342 = sbr.rel (%p340) target = $region24
        $region23: #{tpu_custom_call.1} parent=11 // pred_region
          _
        $region24: #{tpu_custom_call.1} parent=11 // pred_fallthru
          _
        // Predicated region
        $region25: #{tpu_custom_call.1} parent=11 // pred_check
          %p343 = pneg %p209
        $region26: #{tpu_custom_call.1} parent=11 // pred_check_branch
          %345 = sbr.rel (%p343) target = $region28
        $region27: #{tpu_custom_call.1} parent=11 // pred_region
          _
        $region28: #{tpu_custom_call.1} parent=11 // pred_fallthru
          _
        // Predicated region
        $region29: #{tpu_custom_call.1} parent=11 // pred_check
          %p346 = pneg %p230
        $region30: #{tpu_custom_call.1} parent=11 // pred_check_branch
          %348 = sbr.rel (%p346) target = $region32
        $region31: #{tpu_custom_call.1} parent=11 // pred_region
          _
        $region32: #{tpu_custom_call.1} parent=11 // pred_fallthru
          _
        // Predicated region
        $region33: #{tpu_custom_call.1} parent=11 // pred_check
          %p349 = pneg %p251
        $region34: #{tpu_custom_call.1} parent=11 // pred_check_branch
          %351 = sbr.rel (%p349) target = $region36
        $region35: #{tpu_custom_call.1} parent=11 // pred_region
          _
        $region36: #{tpu_custom_call.1} parent=11 // pred_fallthru
          _
        // Predicated region
        $region37: #{tpu_custom_call.1} parent=11 // pred_check
          %p352 = pneg %p272
        $region38: #{tpu_custom_call.1} parent=11 // pred_check_branch
          %354 = sbr.rel (%p352) target = $region40
        $region39: #{tpu_custom_call.1} parent=11 // pred_region
          _
        $region40: #{tpu_custom_call.1} parent=11 // pred_fallthru
          _
        // Predicated region
        $region41: #{tpu_custom_call.1} parent=11 // pred_check
          %p355 = pneg %p293
        $region42: #{tpu_custom_call.1} parent=11 // pred_check_branch
          %357 = sbr.rel (%p355) target = $region44
        $region43: #{tpu_custom_call.1} parent=11 // pred_region
          _
        $region44: #{tpu_custom_call.1} parent=11 // pred_fallthru
          _
      $region12: #{tpu_custom_call.1} parent=5 // pred_fallthru
        _
      %p358 = scmp.lt.s32.totalorder %s21, 2
      // Predicated region
      $region45: #{tpu_custom_call.1} parent=5 // pred_check
        %p359 = pneg %p358
      $region46: #{tpu_custom_call.1} parent=5 // pred_check_branch
        %361 = sbr.rel (%p359) target = $region48
      $region47: #{tpu_custom_call.1} parent=5 // pred_region
        // Predicated region
        $region49: #{tpu_custom_call.1} parent=47 // pred_check
          %p362 = pneg %p41
        $region50: #{tpu_custom_call.1} parent=47 // pred_check_branch
          %364 = sbr.rel (%p362) target = $region52
        $region51: #{tpu_custom_call.1} parent=47 // pred_region
          %p365 = scmp.lt.s32.totalorder %s21, 1
          %s366 = scalar_select %p365, %s21, 1
          %s367 = smul.addr %s366, 8
          %s368 = scalar_lea.vmem %s0, %s367
        $region52: #{tpu_custom_call.1} parent=47 // pred_fallthru
          _
        // Predicated region
        $region53: #{tpu_custom_call.1} parent=47 // pred_check
          %p369 = pneg %p67
        $region54: #{tpu_custom_call.1} parent=47 // pred_check_branch
          %371 = sbr.rel (%p369) target = $region56
        $region55: #{tpu_custom_call.1} parent=47 // pred_region
          %p372 = scmp.lt.s32.totalorder %s21, 1
          %s373 = scalar_select %p372, %s21, 1
          %s374 = smul.addr %s373, 8
          %s375 = scalar_lea.vmem %s1, %s374
        $region56: #{tpu_custom_call.1} parent=47 // pred_fallthru
          _
        // Predicated region
        $region57: #{tpu_custom_call.1} parent=47 // pred_check
          %p376 = pneg %p93
        $region58: #{tpu_custom_call.1} parent=47 // pred_check_branch
          %378 = sbr.rel (%p376) target = $region60
        $region59: #{tpu_custom_call.1} parent=47 // pred_region
          %p379 = scmp.lt.s32.totalorder %s21, 1
          %s380 = scalar_select %p379, %s21, 1
          %s381 = smul.addr %s380, 8
          %s382 = scalar_lea.vmem %s2, %s381
        $region60: #{tpu_custom_call.1} parent=47 // pred_fallthru
          _
        // Predicated region
        $region61: #{tpu_custom_call.1} parent=47 // pred_check
          %p383 = pneg %p119
        $region62: #{tpu_custom_call.1} parent=47 // pred_check_branch
          %385 = sbr.rel (%p383) target = $region64
        $region63: #{tpu_custom_call.1} parent=47 // pred_region
          %p386 = scmp.lt.s32.totalorder %s21, 1
          %s387 = scalar_select %p386, %s21, 1
          %s388 = smul.addr %s387, 8
          %s389 = scalar_lea.vmem %s3, %s388
        $region64: #{tpu_custom_call.1} parent=47 // pred_fallthru
          _
      $region48: #{tpu_custom_call.1} parent=5 // pred_fallthru
        _
      %p390 = scmp.le.s32.totalorder 1, %s21
      %p391 = scmp.lt.s32.totalorder %s21, 3
      %p392 = pnand %p390, %p391
      %p393 = pneg %p392
      // Predicated region
      $region65: #{tpu_custom_call.1} parent=5 // pred_check
        _
      $region66: #{tpu_custom_call.1} parent=5 // pred_check_branch
        %395 = sbr.rel (%p392) target = $region68
      $region67: #{tpu_custom_call.1} parent=5 // pred_region
        %s396 = ssub.s32 %s21, 1
        %p397 = scmp.lt.s32.totalorder %s26, 1
        %s398 = scalar_select %p397, %s26, 1
        %s399 = smul.addr %s398, 8
        %s400 = scalar_lea.vmem %s0, %s399
        %p401 = pneg %p47
        %p402 = pneg %p44
        %p403 = scmp.lt.s32.totalorder %s26, 1
        %s404 = scalar_select %p403, %s26, 1
        %s405 = smul.addr %s404, 8
        %s406 = scalar_lea.vmem %s1, %s405
        %p407 = pneg %p73
        %p408 = pneg %p70
        %p409 = scmp.lt.s32.totalorder %s26, 1
        %s410 = scalar_select %p409, %s26, 1
        %s411 = smul.addr %s410, 8
        %s412 = scalar_lea.vmem %s2, %s411
        %p413 = pneg %p99
        %p414 = pneg %p96
        %p415 = scmp.lt.s32.totalorder %s26, 1
        %s416 = scalar_select %p415, %s26, 1
        %s417 = smul.addr %s416, 8
        %s418 = scalar_lea.vmem %s3, %s417
        %p419 = pneg %p125
        %p420 = pneg %p122
        %p421 = pneg %p146
        %p422 = pneg %p143
        %p423 = pneg %p167
        %p424 = pneg %p164
        %p425 = pneg %p188
        %p426 = pneg %p185
        %p427 = pneg %p209
        %p428 = pneg %p206
        %p429 = pneg %p230
        %p430 = pneg %p227
        %p431 = pneg %p251
        %p432 = pneg %p248
        %p433 = pneg %p272
        %p434 = pneg %p269
        %p435 = pneg %p293
        %p436 = pneg %p290
        %p437 = pneg %p319
        %p438 = pneg %p316
        %s439 = sand.u32 %s306, 1
        %s440 = scalar_lea.sflag [#allocation3], %s439
        %s441 = sand.u32 %s306, 1
        %s442 = smul.addr %s441, 24
        %s443 = scalar_lea.vmem [#allocation2], %s442
        %p444 = scmp.lt.s32.totalorder %s26, 1
        %s445 = scalar_select %p444, %s26, 1
        %s446 = smul.addr %s445, 8
        %s447 = scalar_lea.vmem %s0, %s446
        %p448 = scmp.lt.s32.totalorder %s26, 1
        %s449 = scalar_select %p448, %s26, 1
        %s450 = smul.addr %s449, 8
        %s451 = scalar_lea.vmem %s1, %s450
        %p452 = scmp.lt.s32.totalorder %s26, 1
        %s453 = scalar_select %p452, %s26, 1
        %s454 = smul.addr %s453, 8
        %s455 = scalar_lea.vmem %s2, %s454
        %p456 = scmp.lt.s32.totalorder %s26, 1
        %s457 = scalar_select %p456, %s26, 1
        %s458 = smul.addr %s457, 8
        %s459 = scalar_lea.vmem %s3, %s458
        %v461 = vld [vmem:[%s459] sm:$0xff]
        %v462 = vld [vmem:[%s447] sm:$0xff]
        %v463 = vpack.c.bf16 %v462, %v462
        %v464 = vld [vmem:[%s4] sm:$0x3]
        %v465 = vld [vmem:[%s5] sm:$0x1]
        %v467 = vlaneseq
        %v468 = vshrl.u32 %v467, 7
        %v469 = vsub.s32 0, %v468
        %v470 = vrot.slane %v465, %v469
        %vm472 = vcmask 31744
        %v474 = vsel %vm472, %v463, 0
        %vm476 = vcmask 1041408
        %v478 = vsel %vm476, %v464, 0
        %480 = vmatprep.subr.bf16.mxu0 0
        %481 = vmatpush1.bf16.msra.mxu0 %v478
        %482 = vmatprep.subr.bf16.mxu0 0
        %483 = vmatpush1.bf16.msra.mxu0 0
        %484 = vmatprep.subr.bf16.mxu0 0
        %485 = vmatpush1.bf16.msra.mxu0 0
        %486 = vmatprep.subr.bf16.mxu0 0
        %487 = vmatpush1.bf16.msra.mxu0 0
        %488 = vmatprep.subr.bf16.mxu0 0
        %489 = vmatpush1.bf16.msra.mxu0 0
        %490 = vmatprep.subr.bf16.mxu0 0
        %491 = vmatpush1.bf16.msra.mxu0 0
        %492 = vmatprep.subr.bf16.mxu0 0
        %493 = vmatpush1.bf16.msra.mxu0 0
        %494 = vmatprep.subr.bf16.mxu0 0
        %495 = vmatpush1.bf16.msra.mxu0 0
        %496 = vmatprep.subr.bf16.mxu0 0
        %497 = vmatpush1.bf16.msra.mxu0 0
        %498 = vmatprep.subr.bf16.mxu0 0
        %499 = vmatpush1.bf16.msra.mxu0 0
        %500 = vmatprep.subr.bf16.mxu0 0
        %501 = vmatpush1.bf16.msra.mxu0 0
        %502 = vmatprep.subr.bf16.mxu0 0
        %503 = vmatpush1.bf16.msra.mxu0 0
        %504 = vmatprep.subr.bf16.mxu0 0
        %505 = vmatpush1.bf16.msra.mxu0 0
        %506 = vmatprep.subr.bf16.mxu0 0
        %507 = vmatpush1.bf16.msra.mxu0 0
        %508 = vmatprep.subr.bf16.mxu0 0
        %509 = vmatpush1.bf16.msra.mxu0 0
        %510 = vmatprep.subr.bf16.mxu0 0
        %511 = vmatpush1.bf16.msra.mxu0 0
        %512 = vmatprep.mubr.bf16.mxu0 0
        %513 = vmatmul.mubr.bf16.gmra.mrb[0].mxu0 %v474
        %v514 = vpop.f32.mrb[0].mxu0
        %v515 = vadd.f32 %v470, %v514
        %v516 = vpop.f32.mrb[0].mxu0
        %v517 = vpop.f32.mrb[0].mxu0
        %v518 = vpop.f32.mrb[0].mxu0
        %519 = vdwg.mxu0
        %v520 = vadd.f32 %v515, %v461
        %v521 = vld [vmem:[%s451] sm:$0xff]
        %v522 = vpack.c.bf16 %v521, %v521
        %v523 = vld [vmem:[%s6] sm:$0x3]
        %v524 = vld [vmem:[%s7] sm:$0x1]
        %v526 = vlaneseq
        %v527 = vshrl.u32 %v526, 7
        %v528 = vsub.s32 0, %v527
        %v529 = vrot.slane %v524, %v528
        %vm531 = vcmask 23552
        %v533 = vsel %vm531, %v522, 0
        %vm535 = vcmask 1040384
        %v536 = vsel %vm535, 4294967295, 65535
        %v537 = vsel %vm476, %v536, 0
        %v539 = vand.u32 %v523, %v537
        %541 = vmatprep.subr.bf16.mxu0 0
        %542 = vmatpush1.bf16.msra.mxu0 %v539
        %543 = vmatprep.subr.bf16.mxu0 0
        %544 = vmatpush1.bf16.msra.mxu0 0
        %545 = vmatprep.subr.bf16.mxu0 0
        %546 = vmatpush1.bf16.msra.mxu0 0
        %547 = vmatprep.subr.bf16.mxu0 0
        %548 = vmatpush1.bf16.msra.mxu0 0
        %549 = vmatprep.subr.bf16.mxu0 0
        %550 = vmatpush1.bf16.msra.mxu0 0
        %551 = vmatprep.subr.bf16.mxu0 0
        %552 = vmatpush1.bf16.msra.mxu0 0
        %553 = vmatprep.subr.bf16.mxu0 0
        %554 = vmatpush1.bf16.msra.mxu0 0
        %555 = vmatprep.subr.bf16.mxu0 0
        %556 = vmatpush1.bf16.msra.mxu0 0
        %557 = vmatprep.subr.bf16.mxu0 0
        %558 = vmatpush1.bf16.msra.mxu0 0
        %559 = vmatprep.subr.bf16.mxu0 0
        %560 = vmatpush1.bf16.msra.mxu0 0
        %561 = vmatprep.subr.bf16.mxu0 0
        %562 = vmatpush1.bf16.msra.mxu0 0
        %563 = vmatprep.subr.bf16.mxu0 0
        %564 = vmatpush1.bf16.msra.mxu0 0
        %565 = vmatprep.subr.bf16.mxu0 0
        %566 = vmatpush1.bf16.msra.mxu0 0
        %567 = vmatprep.subr.bf16.mxu0 0
        %568 = vmatpush1.bf16.msra.mxu0 0
        %569 = vmatprep.subr.bf16.mxu0 0
        %570 = vmatpush1.bf16.msra.mxu0 0
        %571 = vmatprep.subr.bf16.mxu0 0
        %572 = vmatpush1.bf16.msra.mxu0 0
        %573 = vmatprep.mubr.bf16.mxu0 0
        %574 = vmatmul.mubr.bf16.gmra.mrb[0].mxu0 %v533
        %v575 = vpop.f32.mrb[0].mxu0
        %v576 = vadd.f32 %v529, %v575
        %v577 = vpop.f32.mrb[0].mxu0
        %v578 = vpop.f32.mrb[0].mxu0
        %v579 = vpop.f32.mrb[0].mxu0
        %580 = vdwg.mxu0
        %v581 = vadd.f32 %v576, %v461
        %v582 = vld [vmem:[%s455] sm:$0xff]
        %v583 = vld [vmem:[%s8] sm:$0x1]
        %585 = vset.pattern.permute.xlu0 0
        %586 = vperm.xlu0 %585, %v582
        %v587 = vpop.permute.xlu0 %586
        %v590 = vlaneseq
        %v591 = vshrl.u32 %v590, 7
        %v592 = vsub.s32 0, %v591
        %v593 = vrot.slane %v583, %v592
        %v595 = vmul.f32 %v587, %v593
        %v596 = vld [vmem:[%s9] sm:$0x1]
        %v598 = vlaneseq
        %v599 = vshrl.u32 %v598, 7
        %v600 = vsub.s32 0, %v599
        %v601 = vrot.slane %v596, %v600
        %v603 = vadd.f32 %v595, %v601
        %v604 = vadd.f32 %v603, %v461
        %v605 = vld [vmem:[%s10] sm:$0x1]
        %v606 = vld [vmem:[%s11] sm:$0x1]
        %vm607 = vcmask 261120
        %v608 = vsel %vm607, %v520, 0.0
        %609 = vadd.xlane.f32.xlu0 %v608
        %v610 = vpop.xlane.xlu0 %609
        %v611 = vrcp.pop 32.0
        %v612 = vmul.f32 %v610, %v611
        %v613 = vsub.f32 %v520, %v612
        %v614 = vmul.f32 %v613, %v613
        %v615 = vsel %vm607, %v614, 0.0
        %616 = vadd.xlane.f32.xlu0 %v615
        %v617 = vpop.xlane.xlu0 %616
        %v618 = vmul.f32 %v617, %v611
        %v619 = vadd.f32 %v618, 1e-05
        %v620 = vrsqrt.pop %v619
        %v621 = vmul.f32 %v613, %v620
        %v623 = vlaneseq
        %v624 = vshrl.u32 %v623, 7
        %v625 = vsub.s32 0, %v624
        %v626 = vrot.slane %v605, %v625
        %v628 = vmul.f32 %v621, %v626
        %v630 = vlaneseq
        %v631 = vshrl.u32 %v630, 7
        %v632 = vsub.s32 0, %v631
        %v633 = vrot.slane %v606, %v632
        %v635 = vadd.f32 %v628, %v633
        %v636 = vsel %vm607, %v581, 0.0
        %637 = vadd.xlane.f32.xlu0 %v636
        %v638 = vpop.xlane.xlu0 %637
        %v639 = vmul.f32 %v638, %v611
        %v640 = vsub.f32 %v581, %v639
        %v641 = vmul.f32 %v640, %v640
        %v642 = vsel %vm607, %v641, 0.0
        %643 = vadd.xlane.f32.xlu0 %v642
        %v644 = vpop.xlane.xlu0 %643
        %v645 = vmul.f32 %v644, %v611
        %v646 = vadd.f32 %v645, 1e-05
        %v647 = vrsqrt.pop %v646
        %v648 = vmul.f32 %v640, %v647
        %v649 = vmul.f32 %v648, %v626
        %v650 = vadd.f32 %v649, %v633
        %v651 = vsel %vm607, %v604, 0.0
        %652 = vadd.xlane.f32.xlu0 %v651
        %v653 = vpop.xlane.xlu0 %652
        %v654 = vmul.f32 %v653, %v611
        %v655 = vsub.f32 %v604, %v654
        %v656 = vmul.f32 %v655, %v655
        %v657 = vsel %vm607, %v656, 0.0
        %658 = vadd.xlane.f32.xlu0 %v657
        %v659 = vpop.xlane.xlu0 %658
        %v660 = vmul.f32 %v659, %v611
        %v661 = vadd.f32 %v660, 1e-05
        %v662 = vrsqrt.pop %v661
        %v663 = vmul.f32 %v655, %v662
        %v664 = vmul.f32 %v663, %v626
        %v665 = vadd.f32 %v664, %v633
        %v666 = vlaneseq
        %v667 = vshrl.u32 %v666, 7
        %v668 = vadd.s32 %v667, 8
        %v669 = vadd.s32 %v667, 16
        %v670 = vlaneseq
        %v671 = vand.u32 %v670, 127
        %v672 = vmul.u32 %v671, 3
        %vm673 = vcmp.eq.s32.totalorder %v667, %v672
        %vm674 = vcmp.eq.s32.totalorder %v668, %v672
        %vm675 = vcmp.eq.s32.totalorder %v669, %v672
        %v676 = vsel %vm673, 1, 0
        %v677 = vsel %vm674, 1, 0
        %v678 = vsel %vm675, 1, 0
        %v679 = vcvt.s32.f32 %v676
        %v680 = vcvt.s32.f32 %v677
        %v681 = vcvt.s32.f32 %v678
        %v682 = vadd.s32 %v672, 1
        %vm683 = vcmp.eq.s32.totalorder %v667, %v682
        %vm684 = vcmp.eq.s32.totalorder %v668, %v682
        %vm685 = vcmp.eq.s32.totalorder %v669, %v682
        %v686 = vsel %vm683, 1, 0
        %v687 = vsel %vm684, 1, 0
        %v688 = vsel %vm685, 1, 0
        %v689 = vcvt.s32.f32 %v686
        %v690 = vcvt.s32.f32 %v687
        %v691 = vcvt.s32.f32 %v688
        %v692 = vadd.s32 %v672, 2
        %vm693 = vcmp.eq.s32.totalorder %v667, %v692
        %vm694 = vcmp.eq.s32.totalorder %v668, %v692
        %vm695 = vcmp.eq.s32.totalorder %v669, %v692
        %v696 = vsel %vm693, 1, 0
        %v697 = vsel %vm694, 1, 0
        %v698 = vsel %vm695, 1, 0
        %v699 = vcvt.s32.f32 %v696
        %v700 = vcvt.s32.f32 %v697
        %v701 = vcvt.s32.f32 %v698
        %vm702 = vcmask 64512
        %v704 = vsel %vm702, %v689, 0
        %v707 = vsel %vm702, %v690, 0
        %v710 = vsel %vm702, %v691, 0
        %712 = vmatprep.subr.mxu0 0.0
        %713 = vmatpush1.msra.mxu0 %v635
        %714 = vmatprep.subr.mxu0 0.0
        %715 = vmatpush1.msra.mxu0 0.0
        %716 = vmatprep.subr.mxu0 0.0
        %717 = vmatpush1.msra.mxu0 0.0
        %718 = vmatprep.subr.mxu0 0.0
        %719 = vmatpush1.msra.mxu0 0.0
        %720 = vmatprep.subr.mxu0 0.0
        %721 = vmatpush1.msra.mxu0 0.0
        %722 = vmatprep.subr.mxu0 0.0
        %723 = vmatpush1.msra.mxu0 0.0
        %724 = vmatprep.subr.mxu0 0.0
        %725 = vmatpush1.msra.mxu0 0.0
        %726 = vmatprep.subr.mxu0 0.0
        %727 = vmatpush1.msra.mxu0 0.0
        %728 = vmatprep.subr.mxu0 0.0
        %729 = vmatpush1.msra.mxu0 0.0
        %730 = vmatprep.subr.mxu0 0.0
        %731 = vmatpush1.msra.mxu0 0.0
        %732 = vmatprep.subr.mxu0 0.0
        %733 = vmatpush1.msra.mxu0 0.0
        %734 = vmatprep.subr.mxu0 0.0
        %735 = vmatpush1.msra.mxu0 0.0
        %736 = vmatprep.subr.mxu0 0.0
        %737 = vmatpush1.msra.mxu0 0.0
        %738 = vmatprep.subr.mxu0 0.0
        %739 = vmatpush1.msra.mxu0 0.0
        %740 = vmatprep.subr.mxu0 0.0
        %741 = vmatpush1.msra.mxu0 0.0
        %742 = vmatprep.subr.mxu0 0.0
        %743 = vmatpush1.msra.mxu0 0.0
        %744 = vmatprep.subr.mxu0 0.0
        %745 = vmatpush1.msra.mxu0 0.0
        %746 = vmatprep.subr.mxu0 0.0
        %747 = vmatpush1.msra.mxu0 0.0
        %748 = vmatprep.subr.mxu0 0.0
        %749 = vmatpush1.msra.mxu0 0.0
        %750 = vmatprep.subr.mxu0 0.0
        %751 = vmatpush1.msra.mxu0 0.0
        %752 = vmatprep.subr.mxu0 0.0
        %753 = vmatpush1.msra.mxu0 0.0
        %754 = vmatprep.subr.mxu0 0.0
        %755 = vmatpush1.msra.mxu0 0.0
        %756 = vmatprep.subr.mxu0 0.0
        %757 = vmatpush1.msra.mxu0 0.0
        %758 = vmatprep.subr.mxu0 0.0
        %759 = vmatpush1.msra.mxu0 0.0
        %760 = vmatprep.subr.mxu0 0.0
        %761 = vmatpush1.msra.mxu0 0.0
        %762 = vmatprep.subr.mxu0 0.0
        %763 = vmatpush1.msra.mxu0 0.0
        %764 = vmatprep.subr.mxu0 0.0
        %765 = vmatpush1.msra.mxu0 0.0
        %766 = vmatprep.subr.mxu0 0.0
        %767 = vmatpush1.msra.mxu0 0.0
        %768 = vmatprep.subr.mxu0 0.0
        %769 = vmatpush1.msra.mxu0 0.0
        %770 = vmatprep.subr.mxu0 0.0
        %771 = vmatpush1.msra.mxu0 0.0
        %772 = vmatprep.subr.mxu0 0.0
        %773 = vmatpush1.msra.mxu0 0.0
        %774 = vmatprep.subr.mxu0 0.0
        %775 = vmatpush1.msra.mxu0 0.0
        %776 = vmatprep.mubr.f32.mxu0 0.0
        %777 = vmatmul.mubr.f32.gmra.mrb[0].mxu0 %v704
        %v778 = vpop.f32.mrb[0].mxu0
        %v779 = vadd.f32 0.0, %v778
        %v780 = vpop.f32.mrb[0].mxu0
        %781 = vmatprep.mubr.f32.mxu0 0.0
        %782 = vmatmul.mubr.f32.gmra.mrb[0].mxu0 %v707
        %v783 = vpop.f32.mrb[0].mxu0
        %v784 = vadd.f32 0.0, %v783
        %v785 = vpop.f32.mrb[0].mxu0
        %786 = vmatprep.mubr.f32.mxu0 0.0
        %787 = vmatmul.mubr.f32.gmra.mrb[0].mxu0 %v710
        %v788 = vpop.f32.mrb[0].mxu0
        %v789 = vadd.f32 0.0, %v788
        %v790 = vpop.f32.mrb[0].mxu0
        %791 = vdwg.mxu0
        %v793 = vsel %vm702, %v679, 0
        %v796 = vsel %vm702, %v680, 0
        %v799 = vsel %vm702, %v681, 0
        %801 = vmatprep.subr.mxu0 0.0
        %802 = vmatpush1.msra.mxu0 %v665
        %803 = vmatprep.subr.mxu0 0.0
        %804 = vmatpush1.msra.mxu0 0.0
        %805 = vmatprep.subr.mxu0 0.0
        %806 = vmatpush1.msra.mxu0 0.0
        %807 = vmatprep.subr.mxu0 0.0
        %808 = vmatpush1.msra.mxu0 0.0
        %809 = vmatprep.subr.mxu0 0.0
        %810 = vmatpush1.msra.mxu0 0.0
        %811 = vmatprep.subr.mxu0 0.0
        %812 = vmatpush1.msra.mxu0 0.0
        %813 = vmatprep.subr.mxu0 0.0
        %814 = vmatpush1.msra.mxu0 0.0
        %815 = vmatprep.subr.mxu0 0.0
        %816 = vmatpush1.msra.mxu0 0.0
        %817 = vmatprep.subr.mxu0 0.0
        %818 = vmatpush1.msra.mxu0 0.0
        %819 = vmatprep.subr.mxu0 0.0
        %820 = vmatpush1.msra.mxu0 0.0
        %821 = vmatprep.subr.mxu0 0.0
        %822 = vmatpush1.msra.mxu0 0.0
        %823 = vmatprep.subr.mxu0 0.0
        %824 = vmatpush1.msra.mxu0 0.0
        %825 = vmatprep.subr.mxu0 0.0
        %826 = vmatpush1.msra.mxu0 0.0
        %827 = vmatprep.subr.mxu0 0.0
        %828 = vmatpush1.msra.mxu0 0.0
        %829 = vmatprep.subr.mxu0 0.0
        %830 = vmatpush1.msra.mxu0 0.0
        %831 = vmatprep.subr.mxu0 0.0
        %832 = vmatpush1.msra.mxu0 0.0
        %833 = vmatprep.subr.mxu0 0.0
        %834 = vmatpush1.msra.mxu0 0.0
        %835 = vmatprep.subr.mxu0 0.0
        %836 = vmatpush1.msra.mxu0 0.0
        %837 = vmatprep.subr.mxu0 0.0
        %838 = vmatpush1.msra.mxu0 0.0
        %839 = vmatprep.subr.mxu0 0.0
        %840 = vmatpush1.msra.mxu0 0.0
        %841 = vmatprep.subr.mxu0 0.0
        %842 = vmatpush1.msra.mxu0 0.0
        %843 = vmatprep.subr.mxu0 0.0
        %844 = vmatpush1.msra.mxu0 0.0
        %845 = vmatprep.subr.mxu0 0.0
        %846 = vmatpush1.msra.mxu0 0.0
        %847 = vmatprep.subr.mxu0 0.0
        %848 = vmatpush1.msra.mxu0 0.0
        %849 = vmatprep.subr.mxu0 0.0
        %850 = vmatpush1.msra.mxu0 0.0
        %851 = vmatprep.subr.mxu0 0.0
        %852 = vmatpush1.msra.mxu0 0.0
        %853 = vmatprep.subr.mxu0 0.0
        %854 = vmatpush1.msra.mxu0 0.0
        %855 = vmatprep.subr.mxu0 0.0
        %856 = vmatpush1.msra.mxu0 0.0
        %857 = vmatprep.subr.mxu0 0.0
        %858 = vmatpush1.msra.mxu0 0.0
        %859 = vmatprep.subr.mxu0 0.0
        %860 = vmatpush1.msra.mxu0 0.0
        %861 = vmatprep.subr.mxu0 0.0
        %862 = vmatpush1.msra.mxu0 0.0
        %863 = vmatprep.subr.mxu0 0.0
        %864 = vmatpush1.msra.mxu0 0.0
        %865 = vmatprep.mubr.f32.mxu0 0.0
        %866 = vmatmul.mubr.f32.gmra.mrb[0].mxu0 %v793
        %v867 = vpop.f32.mrb[0].mxu0
        %v868 = vadd.f32 %v779, %v867
        %v869 = vpop.f32.mrb[0].mxu0
        %870 = vmatprep.mubr.f32.mxu0 0.0
        %871 = vmatmul.mubr.f32.gmra.mrb[0].mxu0 %v796
        %v872 = vpop.f32.mrb[0].mxu0
        %v873 = vadd.f32 %v784, %v872
        %v874 = vpop.f32.mrb[0].mxu0
        %875 = vmatprep.mubr.f32.mxu0 0.0
        %876 = vmatmul.mubr.f32.gmra.mrb[0].mxu0 %v799
        %v877 = vpop.f32.mrb[0].mxu0
        %v878 = vadd.f32 %v789, %v877
        %v879 = vpop.f32.mrb[0].mxu0
        %880 = vdwg.mxu0
        %v882 = vsel %vm702, %v699, 0
        %v885 = vsel %vm702, %v700, 0
        %v888 = vsel %vm702, %v701, 0
        %890 = vmatprep.subr.mxu0 0.0
        %891 = vmatpush1.msra.mxu0 %v650
        %892 = vmatprep.subr.mxu0 0.0
        %893 = vmatpush1.msra.mxu0 0.0
        %894 = vmatprep.subr.mxu0 0.0
        %895 = vmatpush1.msra.mxu0 0.0
        %896 = vmatprep.subr.mxu0 0.0
        %897 = vmatpush1.msra.mxu0 0.0
        %898 = vmatprep.subr.mxu0 0.0
        %899 = vmatpush1.msra.mxu0 0.0
        %900 = vmatprep.subr.mxu0 0.0
        %901 = vmatpush1.msra.mxu0 0.0
        %902 = vmatprep.subr.mxu0 0.0
        %903 = vmatpush1.msra.mxu0 0.0
        %904 = vmatprep.subr.mxu0 0.0
        %905 = vmatpush1.msra.mxu0 0.0
        %906 = vmatprep.subr.mxu0 0.0
        %907 = vmatpush1.msra.mxu0 0.0
        %908 = vmatprep.subr.mxu0 0.0
        %909 = vmatpush1.msra.mxu0 0.0
        %910 = vmatprep.subr.mxu0 0.0
        %911 = vmatpush1.msra.mxu0 0.0
        %912 = vmatprep.subr.mxu0 0.0
        %913 = vmatpush1.msra.mxu0 0.0
        %914 = vmatprep.subr.mxu0 0.0
        %915 = vmatpush1.msra.mxu0 0.0
        %916 = vmatprep.subr.mxu0 0.0
        %917 = vmatpush1.msra.mxu0 0.0
        %918 = vmatprep.subr.mxu0 0.0
        %919 = vmatpush1.msra.mxu0 0.0
        %920 = vmatprep.subr.mxu0 0.0
        %921 = vmatpush1.msra.mxu0 0.0
        %922 = vmatprep.subr.mxu0 0.0
        %923 = vmatpush1.msra.mxu0 0.0
        %924 = vmatprep.subr.mxu0 0.0
        %925 = vmatpush1.msra.mxu0 0.0
        %926 = vmatprep.subr.mxu0 0.0
        %927 = vmatpush1.msra.mxu0 0.0
        %928 = vmatprep.subr.mxu0 0.0
        %929 = vmatpush1.msra.mxu0 0.0
        %930 = vmatprep.subr.mxu0 0.0
        %931 = vmatpush1.msra.mxu0 0.0
        %932 = vmatprep.subr.mxu0 0.0
        %933 = vmatpush1.msra.mxu0 0.0
        %934 = vmatprep.subr.mxu0 0.0
        %935 = vmatpush1.msra.mxu0 0.0
        %936 = vmatprep.subr.mxu0 0.0
        %937 = vmatpush1.msra.mxu0 0.0
        %938 = vmatprep.subr.mxu0 0.0
        %939 = vmatpush1.msra.mxu0 0.0
        %940 = vmatprep.subr.mxu0 0.0
        %941 = vmatpush1.msra.mxu0 0.0
        %942 = vmatprep.subr.mxu0 0.0
        %943 = vmatpush1.msra.mxu0 0.0
        %944 = vmatprep.subr.mxu0 0.0
        %945 = vmatpush1.msra.mxu0 0.0
        %946 = vmatprep.subr.mxu0 0.0
        %947 = vmatpush1.msra.mxu0 0.0
        %948 = vmatprep.subr.mxu0 0.0
        %949 = vmatpush1.msra.mxu0 0.0
        %950 = vmatprep.subr.mxu0 0.0
        %951 = vmatpush1.msra.mxu0 0.0
        %952 = vmatprep.subr.mxu0 0.0
        %953 = vmatpush1.msra.mxu0 0.0
        %954 = vmatprep.mubr.f32.mxu0 0.0
        %955 = vmatmul.mubr.f32.gmra.mrb[0].mxu0 %v882
        %v956 = vpop.f32.mrb[0].mxu0
        %v957 = vadd.f32 0.0, %v956
        %v958 = vpop.f32.mrb[0].mxu0
        %959 = vmatprep.mubr.f32.mxu0 0.0
        %960 = vmatmul.mubr.f32.gmra.mrb[0].mxu0 %v885
        %v961 = vpop.f32.mrb[0].mxu0
        %v962 = vadd.f32 0.0, %v961
        %v963 = vpop.f32.mrb[0].mxu0
        %964 = vmatprep.mubr.f32.mxu0 0.0
        %965 = vmatmul.mubr.f32.gmra.mrb[0].mxu0 %v888
        %v966 = vpop.f32.mrb[0].mxu0
        %v967 = vadd.f32 0.0, %v966
        %v968 = vpop.f32.mrb[0].mxu0
        %969 = vdwg.mxu0
        %v970 = vadd.f32 %v868, %v957
        %v971 = vadd.f32 %v873, %v962
        %v972 = vadd.f32 %v878, %v967
        %973 = vst.msk [vmem:[%s443] sm:$0xff] %vm607, %v970
        %974 = vst.msk [vmem:[%s443 + $0x8] sm:$0xff] %vm607, %v971
        %975 = vst.msk [vmem:[%s443 + $0x10] sm:$0xff] %vm607, %v972
        %s976 = sand.u32 %s306, 1
        %s977 = scalar_lea.sflag [#allocation3], %s976
        %s978 = sand.u32 %s306, 1
        %s979 = smul.addr %s978, 24
        %s980 = scalar_lea.vmem [#allocation2], %s979
        // Predicated region
        $region69: #{tpu_custom_call.1} parent=67 // pred_check
          %p981 = pneg %p316
        $region70: #{tpu_custom_call.1} parent=67 // pred_check_branch
          %983 = sbr.rel (%p981) target = $region72
        $region71: #{tpu_custom_call.1} parent=67 // pred_region
          %s985 = ssub.s32 384, 384
          %986 = vsyncadd %s977, %s985
          %s987 = smul.addr %s26, 3
          %s988 = smul.addr %s987, 128
          %s989 = scalar_lea.hbm %s12, %s988
          %s990 = sshll.u32 %s980, 4
          %s991 = int_to_ptr.vmem [resolvable:$true] %s990
          %996 = dma.vmem_to_hbm [thread:$0]  %s991, 384, %s989, %s977, 128, 128, 8
        $region72: #{tpu_custom_call.1} parent=67 // pred_fallthru
          _
      $region68: #{tpu_custom_call.1} parent=5 // pred_fallthru
        _
      %p997 = scmp.le.s32.totalorder 2, %s21
      // Predicated region
      $region73: #{tpu_custom_call.1} parent=5 // pred_check
        %p998 = pneg %p997
      $region74: #{tpu_custom_call.1} parent=5 // pred_check_branch
        %1000 = sbr.rel (%p998) target = $region76
      $region75: #{tpu_custom_call.1} parent=5 // pred_region
        %s1001 = ssub.s32 %s21, 2
        // Predicated region
        $region77: #{tpu_custom_call.1} parent=75 // pred_check
          %p1002 = pneg %p322
        $region78: #{tpu_custom_call.1} parent=75 // pred_check_branch
          %1004 = sbr.rel (%p1002) target = $region80
        $region79: #{tpu_custom_call.1} parent=75 // pred_region
          %s1005 = sand.u32 %s307, 1
          %s1006 = scalar_lea.sflag [#allocation3], %s1005
          %s1007 = sand.u32 %s307, 1
          %s1008 = smul.addr %s1007, 24
          %s1009 = scalar_lea.vmem [#allocation2], %s1008
          %1010 = dma.done %s1006, 384
        $region80: #{tpu_custom_call.1} parent=75 // pred_fallthru
          _
      $region76: #{tpu_custom_call.1} parent=5 // pred_fallthru
        _
    $region6: #{tpu_custom_call.1} parent=1 // loop_footer
      %s25 = sadd.s32 1, %s21
    $region7: #{tpu_custom_call.1} parent=1 // loop_footer_branch
      %20 = sbr.rel target = $region3
    $region8: #{tpu_custom_call.1} parent=1 // loop_exit
      _
    %1011 = vsyncpa [#allocation3], 1
    %s1012 = scalar_lea.sflag [#allocation3], 1
    %1013 = vsyncpa %s1012, 1

</llo_original>
